<compile_context>
chip_gen: v5e
topology: v5e:2x2
jax: 0.10.0
libtpu: 0.0.40
codegen_flags: <defaults>
</compile_context>

<pallas_src>
import math

import jax
import jax.numpy as jnp
from jax import lax
from jax.experimental import pallas as pl
from jax.experimental.pallas import tpu as pltpu


# ----------------------------------------------------------------------------
# tiling helpers
# ----------------------------------------------------------------------------
def _pick_tile(dim, desired, align):
    """Largest `align`-aligned tile <= desired that divides dim, else full dim."""
    if dim <= desired:
        return dim
    t = (desired // align) * align
    while t >= align:
        if dim % t == 0:
            return t
        t -= align
    return dim


def _pick_bh(num_heads, head_dim, seq_len, budget_bytes=16 * 1024 * 1024):
    """Heads per attention grid step: block stays lane-dense (BH*D % 128 == 0,
    or BH covers all heads) and within a rough VMEM budget."""
    best = None
    for bh in range(1, num_heads + 1):
        if num_heads % bh:
            continue
        lane_ok = ((bh * head_dim) % 128 == 0) or (bh == num_heads)
        approx = (
            3 * 2 * (bh * seq_len * head_dim * 2)   # double-buffered bf16 q/k/v
            + bh * seq_len * seq_len * 4            # f32 scores
            + 2 * (bh * seq_len * head_dim * 4)     # f32 per-head outputs
        )
        if lane_ok and approx <= budget_bytes:
            best = bh
    return best if best is not None else num_heads


# ----------------------------------------------------------------------------
# Kernel 1: tiled linear  y = x @ W^T + b   (bf16 operands, f32 accumulation)
# Weight is passed pre-transposed as (K, Nout) so the MXU consumes it directly.
# ----------------------------------------------------------------------------
def _linear_kernel(x_ref, wt_ref, b_ref, o_ref, acc_ref):
    @pl.when(pl.program_id(2) == 0)
    def _():
        acc_ref[...] = jnp.zeros_like(acc_ref)

    acc_ref[...] += jnp.dot(
        x_ref[...], wt_ref[...], preferred_element_type=jnp.float32
    )

    @pl.when(pl.program_id(2) == pl.num_programs(2) - 1)
    def _():
        o_ref[...] = (acc_ref[...] + b_ref[...]).astype(o_ref.dtype)


def pallas_linear(x2d, w, b, *, out_dtype=jnp.bfloat16, tm=256, tn=256, tk=512):
    M, K = x2d.shape
    Nout = w.shape[0]
    tm = _pick_tile(M, tm, 16)
    tk = _pick_tile(K, tk, 128)
    tn = _pick_tile(Nout, tn, 128)

    x_bf = x2d.astype(jnp.bfloat16)
    wt_bf = jnp.transpose(w).astype(jnp.bfloat16)   # (K, Nout), lane-dense
    b2d = b.reshape(1, Nout).astype(jnp.float32)

    return pl.pallas_call(
        _linear_kernel,
        out_shape=jax.ShapeDtypeStruct((M, Nout), out_dtype),
        grid_spec=pltpu.PrefetchScalarGridSpec(
            num_scalar_prefetch=0,
            grid=(M // tm, Nout // tn, K // tk),
            in_specs=[
                pl.BlockSpec((tm, tk), lambda i, j, k: (i, k)),
                pl.BlockSpec((tk, tn), lambda i, j, k: (k, j)),
                pl.BlockSpec((1, tn), lambda i, j, k: (0, j)),
            ],
            out_specs=pl.BlockSpec((tm, tn), lambda i, j, k: (i, j)),
            scratch_shapes=[pltpu.VMEM((tm, tn), jnp.float32)],
        ),
        compiler_params=pltpu.CompilerParams(
            dimension_semantics=("parallel", "parallel", "arbitrary"),
            vmem_limit_bytes=48 * 1024 * 1024,
        ),
    )(x_bf, wt_bf, b2d)


# ----------------------------------------------------------------------------
# Kernel 2: multi-head attention, BH heads per grid step, heads packed on lanes
#   q, k, v: (N, L, C) bf16 (q already scaled via folded weights)
#   out    : (N, L, C)   (lane-dense stores of (L, BH*D) blocks)
# ----------------------------------------------------------------------------
def _make_attn_kernel(bh, d, has_mask):
    def _body(q_ref, k_ref, v_ref, mask_ref, o_ref):
        q = q_ref[0]   # (L, bh*d) bf16
        k = k_ref[0]
        v = v_ref[0]
        outs = []
        for h in range(bh):
            lo = h * d
            qh = q[:, lo:lo + d]
            kh = k[:, lo:lo + d]
            vh = v[:, lo:lo + d]
            # contract the head dim of q and k directly (no explicit k.T)
            s = lax.dot_general(
                qh, kh, (((1,), (1,)), ((), ())),
                preferred_element_type=jnp.float32,
            )  # (L, L) f32
            if mask_ref is not None:
                s = s + mask_ref[...]
            m = jnp.max(s, axis=-1, keepdims=True)
            p = jnp.exp(s - m)
            denom = jnp.sum(p, axis=-1, keepdims=True)
            p = p * pl.reciprocal(denom, approx=True)
            outs.append(
                jnp.dot(p.astype(vh.dtype), vh, preferred_element_type=jnp.float32)
            )
        # concatenate heads along lanes -> single lane-dense store
        o_ref[0] = jnp.concatenate(outs, axis=-1).astype(o_ref.dtype)

    if has_mask:
        def kernel(q_ref, k_ref, v_ref, mask_ref, o_ref):
            _body(q_ref, k_ref, v_ref, mask_ref, o_ref)
    else:
        def kernel(q_ref, k_ref, v_ref, o_ref):
            _body(q_ref, k_ref, v_ref, None, o_ref)
    return kernel


def pallas_attention(q, k, v, num_heads, mask=None, *, out_dtype=jnp.bfloat16):
    N, L, C = q.shape
    D = C // num_heads
    BH = _pick_bh(num_heads, D, L)

    qkv_spec = pl.BlockSpec((1, L, BH * D), lambda n, hb: (n, 0, hb))
    in_specs = [qkv_spec, qkv_spec, qkv_spec]
    args = [q, k, v]
    if mask is not None:
        in_specs.append(pl.BlockSpec((L, L), lambda n, hb: (0, 0)))
        args.append(mask.astype(jnp.float32))

    kernel = _make_attn_kernel(BH, D, mask is not None)
    return pl.pallas_call(
        kernel,
        out_shape=jax.ShapeDtypeStruct((N, L, C), out_dtype),
        grid_spec=pltpu.PrefetchScalarGridSpec(
            num_scalar_prefetch=0,
            grid=(N, num_heads // BH),
            in_specs=in_specs,
            out_specs=pl.BlockSpec((1, L, BH * D), lambda n, hb: (n, 0, hb)),
        ),
        compiler_params=pltpu.CompilerParams(
            dimension_semantics=("parallel", "parallel"),
            vmem_limit_bytes=48 * 1024 * 1024,
        ),
    )(*args)


# ----------------------------------------------------------------------------
# Full forward pass (glue in plain JAX, hot paths in Pallas kernels above)
# ----------------------------------------------------------------------------
def attention_forward(x, params, num_heads, attn_mask=None):
    L, N, C = x.shape
    H = num_heads
    D = C // H
    scale = D ** (-0.5)

    # Fold the head scale into the Q rows of the in-projection (deletes a full
    # elementwise pass over Q; becomes part of the weights).
    scale_vec = jnp.concatenate(
        [jnp.full((C,), scale, jnp.float32), jnp.ones((2 * C,), jnp.float32)]
    )
    w_in = params["in_proj_weight"] * scale_vec[:, None]
    b_in = params["in_proj_bias"] * scale_vec

    # (L, N, C) -> (N, L, C): single input transpose; all kernels then operate
    # on batch-major, lane-dense activations with heads packed in the channel dim.
    x_nlc = jnp.transpose(x, (1, 0, 2))
    x2d = x_nlc.reshape(N * L, C)

    qkv = pallas_linear(x2d, w_in, b_in, out_dtype=jnp.bfloat16)   # (N*L, 3C)
    qkv = qkv.reshape(N, L, 3 * C)
    q, k, v = jnp.split(qkv, 3, axis=-1)                           # each (N, L, C)

    mask = None
    if attn_mask is not None:
        if attn_mask.dtype == jnp.bool_:
            # large finite negative (not -inf): fully-masked rows stay NaN-free
            mask = jnp.where(attn_mask, jnp.float32(-1e30), jnp.float32(0.0))
        else:
            mask = attn_mask.astype(jnp.float32)

    attn_out = pallas_attention(q, k, v, H, mask, out_dtype=jnp.bfloat16)  # (N, L, C)

    out2d = pallas_linear(
        attn_out.reshape(N * L, C),
        params["out_proj_weight"],
        params["out_proj_bias"],
        out_dtype=jnp.float32,
    )
    # (N, L, C) -> (L, N, C): single output transpose
    return jnp.transpose(out2d.reshape(N, L, C), (1, 0, 2))


# ----------------------------------------------------------------------------
# Deterministic parameter initialization (shapes from the module's __init__)
# ----------------------------------------------------------------------------
def init_params(key, dim, num_heads):
    head_dim = dim // num_heads
    scale = head_dim ** (-0.5)
    k1, k2, k3 = jax.random.split(key, 3)
    in_proj_weight = jax.random.normal(k1, (dim * 3, dim), jnp.float32) * scale
    in_proj_bias = jnp.zeros((dim * 3,), jnp.float32)
    bound = 1.0 / math.sqrt(dim)   # nn.Linear default init
    out_proj_weight = jax.random.uniform(
        k2, (dim, dim), jnp.float32, minval=-bound, maxval=bound
    )
    out_proj_bias = jax.random.uniform(
        k3, (dim,), jnp.float32, minval=-bound, maxval=bound
    )
    return {
        "in_proj_weight": in_proj_weight,
        "in_proj_bias": in_proj_bias,
        "out_proj_weight": out_proj_weight,
        "out_proj_bias": out_proj_bias,
    }


# ----------------------------------------------------------------------------
# Pure-JAX reference. compute_dtype=f32 -> exact module math;
# compute_dtype=bf16 -> mirrors the kernel's mixed precision for tight checks.
# ----------------------------------------------------------------------------
def reference_forward(x, params, num_heads, attn_mask=None,
                      compute_dtype=jnp.float32):
    L, N, C = x.shape
    H = num_heads
    D = C // H
    scale = D ** (-0.5)
    cd = compute_dtype

    scale_vec = jnp.concatenate(
        [jnp.full((C,), scale, jnp.float32), jnp.ones((2 * C,), jnp.float32)]
    )
    w_in = (params["in_proj_weight"] * scale_vec[:, None]).astype(cd)
    b_in = (params["in_proj_bias"] * scale_vec).astype(jnp.float32)

    qkv = (jnp.dot(x.astype(cd), w_in.T, preferred_element_type=jnp.float32)
           + b_in).astype(cd)
    q, k, v = jnp.split(qkv, 3, axis=-1)

    def to_heads(t):
        return jnp.transpose(t.reshape(L, N * H, D), (1, 0, 2))

    q, k, v = to_heads(q), to_heads(k), to_heads(v)
    attn = jnp.einsum("bld,bmd->blm", q, k, preferred_element_type=jnp.float32)
    if attn_mask is not None:
        if attn_mask.dtype == jnp.bool_:
            attn = attn + jnp.where(attn_mask, -1e30, 0.0).astype(jnp.float32)
        else:
            attn = attn + attn_mask.astype(jnp.float32)
    attn = jax.nn.softmax(attn, axis=-1).astype(cd)
    out = jnp.einsum("blm,bmd->bld", attn, v,
                     preferred_element_type=jnp.float32).astype(cd)
    out = jnp.transpose(out, (1, 0, 2)).reshape(L, N, C)
    w_out = params["out_proj_weight"].astype(cd)
    return (jnp.dot(out, w_out.T, preferred_element_type=jnp.float32)
            + params["out_proj_bias"])


if __name__ == "__main__":
    # small shapes: seq L=8, batch N=2, dim C=32, num_heads=8 -> head_dim=4
    L, N, C, H = 8, 2, 32, 8
    key = jax.random.PRNGKey(0)
    kx, kp = jax.random.split(key)
    x = jax.random.normal(kx, (L, N, C), jnp.float32)
    params = init_params(kp, C, H)

    out = attention_forward(x, params, H, attn_mask=None)
    out = jax.block_until_ready(out)
    assert out.shape == (L, N, C)

    # tight check vs a reference using the same bf16-operand / f32-accum math
    ref_bf16 = reference_forward(x, params, H, attn_mask=None,
                                 compute_dtype=jnp.bfloat16)
    err_bf16 = float(jnp.max(jnp.abs(out - ref_bf16)))
    assert jnp.allclose(out, ref_bf16, atol=5e-2, rtol=2e-2), (
        f"mismatch vs bf16-matched reference (max abs err {err_bf16})"
    )

    # looser sanity check vs the exact f32 module math (bf16 operand rounding)
    ref_f32 = reference_forward(x, params, H, attn_mask=None,
                                compute_dtype=jnp.float32)
    err_f32 = float(jnp.max(jnp.abs(out - ref_f32)))
    assert jnp.allclose(out, ref_f32, atol=5e-1, rtol=1e-1), (
        f"mismatch vs f32 reference (max abs err {err_f32})"
    )

    print("KERNEL_OK")
</pallas_src>

<mosaic_0001>
module attributes {stable_mosaic.version = 11 : i64} {
  func.func @_linear_kernel(%arg0: i32, %arg1: i32, %arg2: i32, %arg3: memref<16x32xbf16, #tpu.memory_space<vmem>>, %arg4: memref<32x96xbf16, #tpu.memory_space<vmem>>, %arg5: memref<1x96xf32, #tpu.memory_space<vmem>>, %arg6: memref<16x96xbf16, #tpu.memory_space<vmem>>, %arg7: memref<16x96xf32, #tpu.memory_space<vmem>>) attributes {dimension_semantics = [#tpu.dimension_semantics<parallel>, #tpu.dimension_semantics<parallel>, #tpu.dimension_semantics<arbitrary>], iteration_bounds = array<i64: 1, 1, 1>, scalar_prefetch = 0 : i64, scratch_operands = 1 : i64, tpu.core_type = #tpu.core_type<tc>, window_params = [{transform_indices = @transform_0, window_bounds = array<i64: 16, 32>}, {transform_indices = @transform_1, window_bounds = array<i64: 32, 96>}, {transform_indices = @transform_2, window_bounds = array<i64: 1, 96>}, {transform_indices = @transform_3, window_bounds = array<i64: 16, 96>}]} {
    %c0_i32 = arith.constant 0 : i32
    %0 = arith.cmpi eq, %arg2, %c0_i32 : i32
    %1 = arith.extui %0 : i1 to i32
    %c0_i32_0 = arith.constant 0 : i32
    %2 = arith.cmpi ne, %1, %c0_i32_0 : i32
    scf.if %2 {
      %cst_10 = arith.constant 0.000000e+00 : f32
      %12 = vector.broadcast %cst_10 : f32 to vector<16x96xf32>
      %c0_11 = arith.constant 0 : index
      %c0_12 = arith.constant 0 : index
      %13 = vector.load %arg7[%c0_11, %c0_12] : memref<16x96xf32, #tpu.memory_space<vmem>>, vector<16x96xf32>
      tpu.vector_store %arg7[%c0_11, %c0_12], %12 {strides = array<i32>} : memref<16x96xf32, #tpu.memory_space<vmem>>, vector<16x96xf32>,
    } else {
    }
    %c0 = arith.constant 0 : index
    %c0_1 = arith.constant 0 : index
    %3 = vector.load %arg7[%c0, %c0_1] : memref<16x96xf32, #tpu.memory_space<vmem>>, vector<16x96xf32>
    %c0_2 = arith.constant 0 : index
    %c0_3 = arith.constant 0 : index
    %4 = vector.load %arg3[%c0_2, %c0_3] : memref<16x32xbf16, #tpu.memory_space<vmem>>, vector<16x32xbf16>
    %c0_4 = arith.constant 0 : index
    %c0_5 = arith.constant 0 : index
    %5 = vector.load %arg4[%c0_4, %c0_5] : memref<32x96xbf16, #tpu.memory_space<vmem>>, vector<32x96xbf16>
    %cst = arith.constant dense<0.000000e+00> : vector<16x96xf32>
    %6 = tpu.matmul %4, %5, %cst {dimension_numbers = #tpu.dot_dimension_numbers<[1], [0], [0], [1], [0, 0, 1, 1], [], []>} : vector<16x32xbf16>, vector<32x96xbf16>, vector<16x96xf32> -> vector<16x96xf32>
    %7 = arith.addf %3, %6 : vector<16x96xf32>
    %c0_6 = arith.constant 0 : index
    %c0_7 = arith.constant 0 : index
    %8 = vector.load %arg7[%c0_6, %c0_7] : memref<16x96xf32, #tpu.memory_space<vmem>>, vector<16x96xf32>
    tpu.vector_store %arg7[%c0_6, %c0_7], %7 {strides = array<i32>} : memref<16x96xf32, #tpu.memory_space<vmem>>, vector<16x96xf32>,
    %c0_i32_8 = arith.constant 0 : i32
    %9 = arith.cmpi eq, %arg2, %c0_i32_8 : i32
    %10 = arith.extui %9 : i1 to i32
    %c0_i32_9 = arith.constant 0 : i32
    %11 = arith.cmpi ne, %10, %c0_i32_9 : i32
    scf.if %11 {
      %c0_10 = arith.constant 0 : index
      %c0_11 = arith.constant 0 : index
      %12 = vector.load %arg7[%c0_10, %c0_11] : memref<16x96xf32, #tpu.memory_space<vmem>>, vector<16x96xf32>
      %c0_12 = arith.constant 0 : index
      %c0_13 = arith.constant 0 : index
      %13 = vector.load %arg5[%c0_12, %c0_13] : memref<1x96xf32, #tpu.memory_space<vmem>>, vector<1x96xf32>
      %14 = vector.broadcast %13 : vector<1x96xf32> to vector<16x96xf32>
      %15 = arith.addf %12, %14 : vector<16x96xf32>
      %16 = arith.truncf %15 : vector<16x96xf32> to vector<16x96xbf16>
      %c0_14 = arith.constant 0 : index
      %c0_15 = arith.constant 0 : index
      %17 = vector.load %arg6[%c0_14, %c0_15] : memref<16x96xbf16, #tpu.memory_space<vmem>>, vector<16x96xbf16>
      tpu.vector_store %arg6[%c0_14, %c0_15], %16 {strides = array<i32>} : memref<16x96xbf16, #tpu.memory_space<vmem>>, vector<16x96xbf16>,
    } else {
    }
    return
  }
  func.func @transform_0(%arg0: i32, %arg1: i32, %arg2: i32) -> (i32, i32) {
    %c0_i32 = arith.constant 0 : i32
    return %arg0, %arg2 : i32, i32
  }
  func.func @transform_1(%arg0: i32, %arg1: i32, %arg2: i32) -> (i32, i32) {
    %c0_i32 = arith.constant 0 : i32
    return %arg2, %arg1 : i32, i32
  }
  func.func @transform_2(%arg0: i32, %arg1: i32, %arg2: i32) -> (i32, i32) {
    %c0_i32 = arith.constant 0 : i32
    %c0_i32_0 = arith.constant 0 : i32
    return %c0_i32, %arg1 : i32, i32
  }
  func.func @transform_3(%arg0: i32, %arg1: i32, %arg2: i32) -> (i32, i32) {
    %c0_i32 = arith.constant 0 : i32
    return %arg0, %arg1 : i32, i32
  }
}

</mosaic_0001>

<llo_original>
// kernel: tpu_custom_call.1
$region0: #{tpu_custom_call.1}
  #allocation0 [shape = 'u32[]', space=smem, size = 0x4, offset = 0x4, fixed_abs, tag = 'smem constant byte address 0x4 - core index']
  #allocation1 [shape = 'u32[72,128]{1,0:T(1,128)}', space=vmem, size = 0x9000, scoped, tag = 'internal scratch']
  #allocation2 [shape = 'f32[16,96]{1,0:T(8,128)}', space=vmem, size = 0x2000, scoped, tag = 'scratch operand']
  %s0 = inlined_call_operand.hbm [shape: bf16[16,32], index: 0, kind: input, shape index: {}]
  %s1 = inlined_call_operand.hbm [shape: bf16[32,96], index: 1, kind: input, shape index: {}]
  %s2 = inlined_call_operand.vmem [shape: f32[1,96], index: 2, kind: input, shape index: {}]
  %s3 = inlined_call_operand.hbm [shape: bf16[16,96], index: 3, kind: output, shape index: {}]
  %s4 = sld [smem:[#allocation0]]
  $region38: #{tpu_custom_call.1} parent=0
    _
  %s6 = ssub.s32 1, %s4
  %s7 = scalar_select 0, %s6, %s4
  $region1: #{tpu_custom_call.1} parent=0
    #allocation3 [shape = 'u8[4096]{0}', space=vmem, size = 0x1000, scoped, tag = 'input window, operand 0, single buffered']
    #allocation4 [shape = 's32[1]{0}', space=sflag, size = 0x4, scoped, tag = 'scoped memory for tpu_custom_call.1']
    #allocation5 [shape = 's32[1]{0}', space=sflag, size = 0x4, scoped, tag = 'scoped memory for tpu_custom_call.1']
    #allocation6 [shape = 'u8[8192]{0}', space=vmem, size = 0x2000, scoped, tag = 'input window, operand 1, single buffered']
    #allocation7 [shape = 's32[1]{0}', space=sflag, size = 0x4, scoped, tag = 'scoped memory for tpu_custom_call.1']
    #allocation8 [shape = 'u8[4096]{0}', space=vmem, size = 0x1000, scoped, tag = 'output window, operand 0, single buffered']
    %8 = vsyncpa [#allocation4], 0
    %9 = vsyncpa [#allocation7], 0
    %10 = vsyncpa [#allocation5], 0
    // Predicated region
    $region2: #{tpu_custom_call.1} parent=1 // pred_check
      _
    $region3: #{tpu_custom_call.1} parent=1 // pred_check_branch
      %12 = sbr.rel (0) target = $region5
    $region4: #{tpu_custom_call.1} parent=1 // pred_region
      %14 = vsyncadd [#allocation4], 0
      %s15 = sshll.u32 %s0, 4
      %s16 = int_to_ptr.hbm [resolvable:$true] %s15
      %s17 = sshll.u32 [#allocation3], 4
      %s18 = int_to_ptr.vmem [resolvable:$true] %s17
      %23 = dma.hbm_to_vmem [thread:$0]  %s16, 128, %s18, [#allocation4], 64, 64, 4
    $region5: #{tpu_custom_call.1} parent=1 // pred_fallthru
      _
    // Predicated region
    $region6: #{tpu_custom_call.1} parent=1 // pred_check
      _
    $region7: #{tpu_custom_call.1} parent=1 // pred_check_branch
      %25 = sbr.rel (0) target = $region9
    $region8: #{tpu_custom_call.1} parent=1 // pred_region
      %27 = vsyncadd [#allocation7], 0
      %s28 = sshll.u32 %s1, 4
      %s29 = int_to_ptr.hbm [resolvable:$true] %s28
      %s30 = sshll.u32 [#allocation6], 4
      %s31 = int_to_ptr.vmem [resolvable:$true] %s30
      %36 = dma.hbm_to_vmem [thread:$0]  %s29, 256, %s31, [#allocation7], 64, 64, 4
    $region9: #{tpu_custom_call.1} parent=1 // pred_fallthru
      _
    // Predicated region
    $region10: #{tpu_custom_call.1} parent=1 // pred_check
      _
    $region11: #{tpu_custom_call.1} parent=1 // pred_check_branch
      %38 = sbr.rel (0) target = $region13
    $region12: #{tpu_custom_call.1} parent=1 // pred_region
      _
    $region13: #{tpu_custom_call.1} parent=1 // pred_fallthru
      _
    // Predicated region
    $region14: #{tpu_custom_call.1} parent=1 // pred_check
      _
    $region15: #{tpu_custom_call.1} parent=1 // pred_check_branch
      %40 = sbr.rel (0) target = $region17
    $region16: #{tpu_custom_call.1} parent=1 // pred_region
      %42 = dma.done [#allocation4], 128
    $region17: #{tpu_custom_call.1} parent=1 // pred_fallthru
      _
    // Predicated region
    $region18: #{tpu_custom_call.1} parent=1 // pred_check
      _
    $region19: #{tpu_custom_call.1} parent=1 // pred_check_branch
      %44 = sbr.rel (0) target = $region21
    $region20: #{tpu_custom_call.1} parent=1 // pred_region
      %46 = dma.done [#allocation7], 256
    $region21: #{tpu_custom_call.1} parent=1 // pred_fallthru
      _
    %p48 = scmp.eq.s32.totalorder 0, 0
    // Predicated region
    $region22: #{tpu_custom_call.1} parent=1 // pred_check
      %p49 = pneg %p48
    $region23: #{tpu_custom_call.1} parent=1 // pred_check_branch
      %51 = sbr.rel (%p49) target = $region25
    $region24: #{tpu_custom_call.1} parent=1 // pred_region
      %vm52 = vcmask 785408
      %53 = vst.msk [vmem:[#allocation2] sm:$0xff] %vm52, 0.0
      %54 = vst.msk [vmem:[#allocation2 + $0x8] sm:$0xff] %vm52, 0.0
    $region25: #{tpu_custom_call.1} parent=1 // pred_fallthru
      _
    %v55 = vld [vmem:[#allocation2] sm:$0xff]
    %v56 = vld [vmem:[#allocation2 + $0x8] sm:$0xff]
    %v57 = vld [vmem:[#allocation3] sm:$0xf]
    %v58 = vld [vmem:[#allocation3 + $0x4] sm:$0xf]
    %v59 = vld [vmem:[#allocation6] sm:$0xf]
    %v60 = vld [vmem:[#allocation6 + $0x4] sm:$0xf]
    %v61 = vld [vmem:[#allocation6 + $0x8] sm:$0xf]
    %v62 = vld [vmem:[#allocation6 + $0xc] sm:$0xf]
    %v65 = vunpack.c.l.b16 %v57
    %v66 = vunpack.c.l.b16 %v58
    %v67 = vpack.c.b16 %v66, %v65
    %v72 = vunpack.c.l.b16 %v59
    %v73 = vunpack.c.l.b16 %v60
    %v74 = vunpack.c.l.b16 %v61
    %v75 = vunpack.c.l.b16 %v62
    %v76 = vpack.c.b16 %v73, %v72
    %v77 = vpack.c.b16 %v75, %v74
    %vm80 = vcmask 261120
    %v82 = vsel %vm80, %v67, 0
    %84 = vmatpush.bf16.msra.mxu0 0
    %85 = vmatpush.bf16.msra.mxu0 0
    %86 = vmatpush.bf16.msra.mxu0 0
    %87 = vmatpush.bf16.msra.mxu0 0
    %88 = vmatpush.bf16.msra.mxu0 0
    %89 = vmatpush.bf16.msra.mxu0 0
    %90 = vmatpush.bf16.msra.mxu0 %v77
    %91 = vmatpush.bf16.msra.mxu0 %v76
    %92 = vmatmul.bf16.gmra.mxu0 %v82
    %v93 = vpop.f32.mrf.mxu0
    %v94 = vadd.f32 0.0, %v93
    %v95 = vpop.f32.mrf.mxu0
    %v96 = vadd.f32 0.0, %v95
    %97 = vdwg.mxu0
    %v98 = vadd.f32 %v55, %v94
    %v99 = vadd.f32 %v56, %v96
    %vm100 = vcmask 785408
    %101 = vst.msk [vmem:[#allocation2] sm:$0xff] %vm100, %v98
    %102 = vst.msk [vmem:[#allocation2 + $0x8] sm:$0xff] %vm100, %v99
    // Predicated region
    $region26: #{tpu_custom_call.1} parent=1 // pred_check
      %p103 = pneg %p48
    $region27: #{tpu_custom_call.1} parent=1 // pred_check_branch
      %105 = sbr.rel (%p103) target = $region29
    $region28: #{tpu_custom_call.1} parent=1 // pred_region
      %v106 = vld [vmem:[#allocation2] sm:$0xff]
      %v107 = vld [vmem:[#allocation2 + $0x8] sm:$0xff]
      %v108 = vld [vmem:[%s2] sm:$0x1]
      %v110 = vperm.slane %v108, 0
      %v112 = vadd.f32 %v106, %v110
      %v113 = vadd.f32 %v107, %v110
      %v114 = vpack.c.bf16 %v112, %v112
      %v115 = vpack.c.bf16 %v113, %v113
      %vm116 = vcmask 781312
      %117 = vst.msk [vmem:[#allocation8] sm:$0xf] %vm116, %v114
      %118 = vst.msk [vmem:[#allocation8 + $0x4] sm:$0xf] %vm116, %v115
    $region29: #{tpu_custom_call.1} parent=1 // pred_fallthru
      _
    // Predicated region
    $region30: #{tpu_custom_call.1} parent=1 // pred_check
      _
    $region31: #{tpu_custom_call.1} parent=1 // pred_check_branch
      %120 = sbr.rel (0) target = $region33
    $region32: #{tpu_custom_call.1} parent=1 // pred_region
      %122 = vsyncadd [#allocation5], 0
      %s123 = sshll.u32 [#allocation8], 4
      %s124 = int_to_ptr.vmem [resolvable:$true] %s123
      %s125 = sshll.u32 %s3, 4
      %s126 = int_to_ptr.hbm [resolvable:$true] %s125
      %131 = dma.vmem_to_hbm [thread:$0]  %s124, 128, %s126, [#allocation5], 64, 64, 4
    $region33: #{tpu_custom_call.1} parent=1 // pred_fallthru
      _
    // Predicated region
    $region34: #{tpu_custom_call.1} parent=1 // pred_check
      _
    $region35: #{tpu_custom_call.1} parent=1 // pred_check_branch
      %133 = sbr.rel (0) target = $region37
    $region36: #{tpu_custom_call.1} parent=1 // pred_region
      %135 = dma.done [#allocation5], 128
    $region37: #{tpu_custom_call.1} parent=1 // pred_fallthru
      _
    %136 = vsyncpa [#allocation4], 1
    %137 = vsyncpa [#allocation7], 1
    %138 = vsyncpa [#allocation5], 1

</llo_original>
